<compile_context>
chip_gen: v6e
topology: v6e:2x2x1
jax: 0.10.0
libtpu: 0.0.40
codegen_flags: <defaults>
</compile_context>

<pallas_src>
import functools

import jax
import jax.numpy as jnp
from jax import lax
from jax.experimental import pallas as pl
from jax.experimental.pallas import tpu as pltpu


def _vrp_lstm_kernel(x_ref, lstm_ref, head_ref, out_ref, *, seq_len, batch,
                     input_dim, hidden_dim):
    """Whole forward pass in one kernel invocation (everything fits in VMEM).

    x_ref    : (T*B, D)    time-major flattened input (rows: t0b0, t0b1, t1b0, ...)
    lstm_ref : (H+D+1, 4H) packed [Wh ; Wx ; b], gate order (i, f, g, o),
               i/f/o columns pre-scaled by 0.5 (single-tanh trick).
    head_ref : (H+3, 16)   packed [W1 ; b1 ; w2_row ; b2_row]
    out_ref  : (B, 1)
    """
    T, B, D, H = seq_len, batch, input_dim, hidden_dim

    # ---- Unpack weights with static slices (hoisted out of the recurrence).
    wh = lstm_ref[0:H, :]                    # (H, 4H)  sublane-aligned
    wx = lstm_ref[H:H + D, :]                # (D, 4H)
    b = lstm_ref[H + D:H + D + 1, :]         # (1, 4H)
    w1 = head_ref[0:H, :]                    # (H, 16)  sublane-aligned
    b1 = head_ref[H:H + 1, :]                # (1, 16)
    w2 = head_ref[H + 1:H + 2, :]            # (1, 16)
    b2 = head_ref[H + 2:H + 3, 0:1]          # (1, 1)

    # ---- Hoisted input projection: single (T*B, D) x (D, 4H) matmul + bias.
    xw = jnp.dot(x_ref[...], wx, preferred_element_type=jnp.float32) + b    # (T*B, 4H)

    # ---- Recurrence: fully unrolled; one fused (B,H)x(H,4H) MXU matmul and
    #      one full-width tanh (EUP) per step.
    h = jnp.zeros((B, H), jnp.float32)
    c = jnp.zeros((B, H), jnp.float32)
    for t in range(T):
        xw_t = xw[t * B:(t + 1) * B]                       # static row slice (B, 4H)
        if t == 0:
            gates = xw_t                                   # h0 == 0 -> skip h @ Wh
        else:
            gates = xw_t + jnp.dot(h, wh, preferred_element_type=jnp.float32)

        th = jnp.tanh(gates)                               # single EUP pass (B, 4H)
        sg = 0.5 * th + 0.5                                # sigmoid(x) for the pre-scaled i/f/o cols
        i = sg[:, 0 * H:1 * H]
        f = sg[:, 1 * H:2 * H]
        g = th[:, 2 * H:3 * H]                             # g column was NOT pre-scaled
        o = sg[:, 3 * H:4 * H]

        c = i * g if t == 0 else f * c + i * g             # c0 == 0
        h = o * jnp.tanh(c)

    # ---- Epilogue: fc1 + ReLU on the MXU, fc2 as a VPU multiply + lane reduce.
    z = jnp.maximum(jnp.dot(h, w1, preferred_element_type=jnp.float32) + b1, 0.0)  # (B, 16)
    y = jnp.sum(z * w2, axis=-1, keepdims=True) + b2                               # (B, 1)
    out_ref[...] = y


def pack_params(params):
    """Pack the 8 logical parameter arrays into 2 kernel operands.

    Applies the single-tanh pre-scaling (0.5 on i/f/o gate columns) so the
    kernel only needs one tanh per step.
    """
    H = params["wh"].shape[0]
    D = params["wx"].shape[0]
    # Gate-column scale: (i, f, g, o) -> (0.5, 0.5, 1.0, 0.5).
    scale = jnp.concatenate(
        [jnp.full((1, H), 0.5, jnp.float32),
         jnp.full((1, H), 0.5, jnp.float32),
         jnp.ones((1, H), jnp.float32),
         jnp.full((1, H), 0.5, jnp.float32)], axis=-1)                   # (1, 4H)
    lstm_w = jnp.concatenate(
        [params["wh"] * scale,                                           # rows 0:H   (aligned)
         params["wx"] * scale,                                           # rows H:H+D
         params["b"] * scale], axis=0).astype(jnp.float32)               # row  H+D
    b2_row = jnp.concatenate(
        [params["b2"], jnp.zeros((1, 15), jnp.float32)], axis=-1)        # (1, 16)
    head_w = jnp.concatenate(
        [params["w1"],                                                   # rows 0:H   (aligned)
         params["b1"],                                                   # row  H
         params["w2"],                                                   # row  H+1
         b2_row], axis=0).astype(jnp.float32)                            # row  H+2
    return lstm_w, head_w, D, H


def vrp_lstm_forward(x, params):
    """x: (B, T, D) float32 batch-first, like the PyTorch module."""
    B, T, D = x.shape
    lstm_w, head_w, D_, H = pack_params(params)
    assert D_ == D

    # Time-major flatten in the wrapper (cheap at these sizes): rows grouped by
    # timestep so the kernel takes contiguous static slices per step.
    x2d = jnp.transpose(x, (1, 0, 2)).reshape(T * B, D).astype(jnp.float32)

    vmem = pl.BlockSpec(memory_space=pltpu.MemorySpace.VMEM)
    kernel = functools.partial(_vrp_lstm_kernel, seq_len=T, batch=B,
                               input_dim=D, hidden_dim=H)
    return pl.pallas_call(
        kernel,
        out_shape=jax.ShapeDtypeStruct((B, 1), jnp.float32),
        in_specs=[vmem, vmem, vmem],
        out_specs=vmem,
    )(x2d, lstm_w, head_w)


def init_params(key, input_dim=2, hidden_dim=32):
    """Deterministic synthetic parameters matching nn.LSTM / nn.Linear shapes."""
    ks = jax.random.split(key, 8)
    H = hidden_dim
    s = 1.0 / jnp.sqrt(jnp.float32(H))
    # PyTorch nn.LSTM layout: weight_ih (4H, D), weight_hh (4H, H), biases (4H,)
    # with gate order (i, f, g, o) stacked along the leading axis.
    w_ih = jax.random.uniform(ks[0], (4 * H, input_dim), jnp.float32, -s, s)
    w_hh = jax.random.uniform(ks[1], (4 * H, H), jnp.float32, -s, s)
    b_ih = jax.random.uniform(ks[2], (4 * H,), jnp.float32, -s, s)
    b_hh = jax.random.uniform(ks[3], (4 * H,), jnp.float32, -s, s)
    # Logical fused, gate-concatenated packing: (D, 4H), (H, 4H), (1, 4H).
    wx = w_ih.T
    wh = w_hh.T
    b = (b_ih + b_hh).reshape(1, 4 * H)
    # fc1: torch (16, H) -> pass (H, 16); fc2: torch (1, 16) kept as a (1, 16) row.
    w1 = jax.random.uniform(ks[4], (H, 16), jnp.float32, -s, s)
    b1 = jax.random.uniform(ks[5], (1, 16), jnp.float32, -s, s)
    w2 = jax.random.uniform(ks[6], (1, 16), jnp.float32, -0.25, 0.25)
    b2 = jax.random.uniform(ks[7], (1, 1), jnp.float32, -0.25, 0.25)
    return {"wx": wx, "wh": wh, "b": b, "w1": w1, "b1": b1, "w2": w2, "b2": b2}


def reference_forward(x, params):
    """Pure-JAX reference implementing the same PyTorch LSTM semantics."""
    B, T, D = x.shape
    H = params["wh"].shape[0]

    def step(carry, x_t):
        h, c = carry
        gates = x_t @ params["wx"] + h @ params["wh"] + params["b"]
        i = jax.nn.sigmoid(gates[:, 0 * H:1 * H])
        f = jax.nn.sigmoid(gates[:, 1 * H:2 * H])
        g = jnp.tanh(gates[:, 2 * H:3 * H])
        o = jax.nn.sigmoid(gates[:, 3 * H:4 * H])
        c_new = f * c + i * g
        h_new = o * jnp.tanh(c_new)
        return (h_new, c_new), None

    (h_last, _), _ = lax.scan(
        step,
        (jnp.zeros((B, H), jnp.float32), jnp.zeros((B, H), jnp.float32)),
        jnp.transpose(x, (1, 0, 2)))
    z = jnp.maximum(h_last @ params["w1"] + params["b1"], 0.0)
    return z @ params["w2"].T + params["b2"]


if __name__ == "__main__":
    key = jax.random.PRNGKey(0)
    k_x, k_p = jax.random.split(key)

    B, T, D, H = 2, 8, 2, 32
    x = jax.random.normal(k_x, (B, T, D), jnp.float32)
    params = init_params(k_p, input_dim=D, hidden_dim=H)

    out = jax.block_until_ready(vrp_lstm_forward(x, params))
    ref = jax.block_until_ready(reference_forward(x, params))

    assert out.shape == (B, 1)
    assert jnp.allclose(out, ref, atol=1e-5, rtol=1e-5), (out, ref)
    print("KERNEL_OK")
</pallas_src>

<mosaic_0001>
module attributes {stable_mosaic.version = 11 : i64} {
  func.func @_vrp_lstm_kernel(%arg0: memref<16x2xf32, #tpu.memory_space<vmem>>, %arg1: memref<35x128xf32, #tpu.memory_space<vmem>>, %arg2: memref<35x16xf32, #tpu.memory_space<vmem>>, %arg3: memref<2x1xf32, #tpu.memory_space<vmem>>) attributes {dimension_semantics = [], scalar_prefetch = 0 : i64, scratch_operands = 0 : i64, tpu.core_type = #tpu.core_type<tc>} {
    %c0 = arith.constant 0 : index
    %c0_0 = arith.constant 0 : index
    %0 = vector.load %arg1[%c0, %c0_0] : memref<35x128xf32, #tpu.memory_space<vmem>>, vector<32x128xf32>
    %c32 = arith.constant 32 : index
    %c0_1 = arith.constant 0 : index
    %1 = vector.load %arg1[%c32, %c0_1] : memref<35x128xf32, #tpu.memory_space<vmem>>, vector<2x128xf32>
    %c34 = arith.constant 34 : index
    %c0_2 = arith.constant 0 : index
    %2 = vector.load %arg1[%c34, %c0_2] : memref<35x128xf32, #tpu.memory_space<vmem>>, vector<1x128xf32>
    %c0_3 = arith.constant 0 : index
    %c0_4 = arith.constant 0 : index
    %3 = vector.load %arg2[%c0_3, %c0_4] : memref<35x16xf32, #tpu.memory_space<vmem>>, vector<32x16xf32>
    %c32_5 = arith.constant 32 : index
    %c0_6 = arith.constant 0 : index
    %4 = vector.load %arg2[%c32_5, %c0_6] : memref<35x16xf32, #tpu.memory_space<vmem>>, vector<1x16xf32>
    %c33 = arith.constant 33 : index
    %c0_7 = arith.constant 0 : index
    %5 = vector.load %arg2[%c33, %c0_7] : memref<35x16xf32, #tpu.memory_space<vmem>>, vector<1x16xf32>
    %c34_8 = arith.constant 34 : index
    %c0_9 = arith.constant 0 : index
    %6 = vector.load %arg2[%c34_8, %c0_9] : memref<35x16xf32, #tpu.memory_space<vmem>>, vector<1x1xf32>
    %c0_10 = arith.constant 0 : index
    %c0_11 = arith.constant 0 : index
    %7 = vector.load %arg0[%c0_10, %c0_11] : memref<16x2xf32, #tpu.memory_space<vmem>>, vector<16x2xf32>
    %cst = arith.constant dense<0.000000e+00> : vector<16x128xf32>
    %8 = tpu.matmul %7, %1, %cst {dimension_numbers = #tpu.dot_dimension_numbers<[1], [0], [0], [1], [0, 0, 1, 1], [], []>} : vector<16x2xf32>, vector<2x128xf32>, vector<16x128xf32> -> vector<16x128xf32>
    %9 = vector.broadcast %2 : vector<1x128xf32> to vector<16x128xf32>
    %10 = arith.addf %8, %9 : vector<16x128xf32>
    %11 = vector.extract_strided_slice %10 {offsets = [0, 0], sizes = [2, 128], strides = [1, 1]} : vector<16x128xf32> to vector<2x128xf32>
    %12 = math.tanh %11 : vector<2x128xf32>
    %cst_12 = arith.constant 5.000000e-01 : f32
    %13 = vector.broadcast %cst_12 : f32 to vector<2x128xf32>
    %14 = arith.mulf %13, %12 : vector<2x128xf32>
    %cst_13 = arith.constant 5.000000e-01 : f32
    %15 = vector.broadcast %cst_13 : f32 to vector<2x128xf32>
    %16 = arith.addf %14, %15 : vector<2x128xf32>
    %17 = vector.extract_strided_slice %16 {offsets = [0, 0], sizes = [2, 32], strides = [1, 1]} : vector<2x128xf32> to vector<2x32xf32>
    %18 = vector.extract_strided_slice %12 {offsets = [0, 64], sizes = [2, 32], strides = [1, 1]} : vector<2x128xf32> to vector<2x32xf32>
    %19 = vector.extract_strided_slice %16 {offsets = [0, 96], sizes = [2, 32], strides = [1, 1]} : vector<2x128xf32> to vector<2x32xf32>
    %20 = arith.mulf %17, %18 : vector<2x32xf32>
    %21 = math.tanh %20 : vector<2x32xf32>
    %22 = arith.mulf %19, %21 : vector<2x32xf32>
    %23 = vector.extract_strided_slice %10 {offsets = [2, 0], sizes = [2, 128], strides = [1, 1]} : vector<16x128xf32> to vector<2x128xf32>
    %cst_14 = arith.constant dense<0.000000e+00> : vector<2x128xf32>
    %24 = tpu.matmul %22, %0, %cst_14 {dimension_numbers = #tpu.dot_dimension_numbers<[1], [0], [0], [1], [0, 0, 1, 1], [], []>} : vector<2x32xf32>, vector<32x128xf32>, vector<2x128xf32> -> vector<2x128xf32>
    %25 = arith.addf %23, %24 : vector<2x128xf32>
    %26 = math.tanh %25 : vector<2x128xf32>
    %cst_15 = arith.constant 5.000000e-01 : f32
    %27 = vector.broadcast %cst_15 : f32 to vector<2x128xf32>
    %28 = arith.mulf %27, %26 : vector<2x128xf32>
    %cst_16 = arith.constant 5.000000e-01 : f32
    %29 = vector.broadcast %cst_16 : f32 to vector<2x128xf32>
    %30 = arith.addf %28, %29 : vector<2x128xf32>
    %31 = vector.extract_strided_slice %30 {offsets = [0, 0], sizes = [2, 32], strides = [1, 1]} : vector<2x128xf32> to vector<2x32xf32>
    %32 = vector.extract_strided_slice %30 {offsets = [0, 32], sizes = [2, 32], strides = [1, 1]} : vector<2x128xf32> to vector<2x32xf32>
    %33 = vector.extract_strided_slice %26 {offsets = [0, 64], sizes = [2, 32], strides = [1, 1]} : vector<2x128xf32> to vector<2x32xf32>
    %34 = vector.extract_strided_slice %30 {offsets = [0, 96], sizes = [2, 32], strides = [1, 1]} : vector<2x128xf32> to vector<2x32xf32>
    %35 = arith.mulf %32, %20 : vector<2x32xf32>
    %36 = arith.mulf %31, %33 : vector<2x32xf32>
    %37 = arith.addf %35, %36 : vector<2x32xf32>
    %38 = math.tanh %37 : vector<2x32xf32>
    %39 = arith.mulf %34, %38 : vector<2x32xf32>
    %40 = vector.extract_strided_slice %10 {offsets = [4, 0], sizes = [2, 128], strides = [1, 1]} : vector<16x128xf32> to vector<2x128xf32>
    %cst_17 = arith.constant dense<0.000000e+00> : vector<2x128xf32>
    %41 = tpu.matmul %39, %0, %cst_17 {dimension_numbers = #tpu.dot_dimension_numbers<[1], [0], [0], [1], [0, 0, 1, 1], [], []>} : vector<2x32xf32>, vector<32x128xf32>, vector<2x128xf32> -> vector<2x128xf32>
    %42 = arith.addf %40, %41 : vector<2x128xf32>
    %43 = math.tanh %42 : vector<2x128xf32>
    %cst_18 = arith.constant 5.000000e-01 : f32
    %44 = vector.broadcast %cst_18 : f32 to vector<2x128xf32>
    %45 = arith.mulf %44, %43 : vector<2x128xf32>
    %cst_19 = arith.constant 5.000000e-01 : f32
    %46 = vector.broadcast %cst_19 : f32 to vector<2x128xf32>
    %47 = arith.addf %45, %46 : vector<2x128xf32>
    %48 = vector.extract_strided_slice %47 {offsets = [0, 0], sizes = [2, 32], strides = [1, 1]} : vector<2x128xf32> to vector<2x32xf32>
    %49 = vector.extract_strided_slice %47 {offsets = [0, 32], sizes = [2, 32], strides = [1, 1]} : vector<2x128xf32> to vector<2x32xf32>
    %50 = vector.extract_strided_slice %43 {offsets = [0, 64], sizes = [2, 32], strides = [1, 1]} : vector<2x128xf32> to vector<2x32xf32>
    %51 = vector.extract_strided_slice %47 {offsets = [0, 96], sizes = [2, 32], strides = [1, 1]} : vector<2x128xf32> to vector<2x32xf32>
    %52 = arith.mulf %49, %37 : vector<2x32xf32>
    %53 = arith.mulf %48, %50 : vector<2x32xf32>
    %54 = arith.addf %52, %53 : vector<2x32xf32>
    %55 = math.tanh %54 : vector<2x32xf32>
    %56 = arith.mulf %51, %55 : vector<2x32xf32>
    %57 = vector.extract_strided_slice %10 {offsets = [6, 0], sizes = [2, 128], strides = [1, 1]} : vector<16x128xf32> to vector<2x128xf32>
    %cst_20 = arith.constant dense<0.000000e+00> : vector<2x128xf32>
    %58 = tpu.matmul %56, %0, %cst_20 {dimension_numbers = #tpu.dot_dimension_numbers<[1], [0], [0], [1], [0, 0, 1, 1], [], []>} : vector<2x32xf32>, vector<32x128xf32>, vector<2x128xf32> -> vector<2x128xf32>
    %59 = arith.addf %57, %58 : vector<2x128xf32>
    %60 = math.tanh %59 : vector<2x128xf32>
    %cst_21 = arith.constant 5.000000e-01 : f32
    %61 = vector.broadcast %cst_21 : f32 to vector<2x128xf32>
    %62 = arith.mulf %61, %60 : vector<2x128xf32>
    %cst_22 = arith.constant 5.000000e-01 : f32
    %63 = vector.broadcast %cst_22 : f32 to vector<2x128xf32>
    %64 = arith.addf %62, %63 : vector<2x128xf32>
    %65 = vector.extract_strided_slice %64 {offsets = [0, 0], sizes = [2, 32], strides = [1, 1]} : vector<2x128xf32> to vector<2x32xf32>
    %66 = vector.extract_strided_slice %64 {offsets = [0, 32], sizes = [2, 32], strides = [1, 1]} : vector<2x128xf32> to vector<2x32xf32>
    %67 = vector.extract_strided_slice %60 {offsets = [0, 64], sizes = [2, 32], strides = [1, 1]} : vector<2x128xf32> to vector<2x32xf32>
    %68 = vector.extract_strided_slice %64 {offsets = [0, 96], sizes = [2, 32], strides = [1, 1]} : vector<2x128xf32> to vector<2x32xf32>
    %69 = arith.mulf %66, %54 : vector<2x32xf32>
    %70 = arith.mulf %65, %67 : vector<2x32xf32>
    %71 = arith.addf %69, %70 : vector<2x32xf32>
    %72 = math.tanh %71 : vector<2x32xf32>
    %73 = arith.mulf %68, %72 : vector<2x32xf32>
    %74 = vector.extract_strided_slice %10 {offsets = [8, 0], sizes = [2, 128], strides = [1, 1]} : vector<16x128xf32> to vector<2x128xf32>
    %cst_23 = arith.constant dense<0.000000e+00> : vector<2x128xf32>
    %75 = tpu.matmul %73, %0, %cst_23 {dimension_numbers = #tpu.dot_dimension_numbers<[1], [0], [0], [1], [0, 0, 1, 1], [], []>} : vector<2x32xf32>, vector<32x128xf32>, vector<2x128xf32> -> vector<2x128xf32>
    %76 = arith.addf %74, %75 : vector<2x128xf32>
    %77 = math.tanh %76 : vector<2x128xf32>
    %cst_24 = arith.constant 5.000000e-01 : f32
    %78 = vector.broadcast %cst_24 : f32 to vector<2x128xf32>
    %79 = arith.mulf %78, %77 : vector<2x128xf32>
    %cst_25 = arith.constant 5.000000e-01 : f32
    %80 = vector.broadcast %cst_25 : f32 to vector<2x128xf32>
    %81 = arith.addf %79, %80 : vector<2x128xf32>
    %82 = vector.extract_strided_slice %81 {offsets = [0, 0], sizes = [2, 32], strides = [1, 1]} : vector<2x128xf32> to vector<2x32xf32>
    %83 = vector.extract_strided_slice %81 {offsets = [0, 32], sizes = [2, 32], strides = [1, 1]} : vector<2x128xf32> to vector<2x32xf32>
    %84 = vector.extract_strided_slice %77 {offsets = [0, 64], sizes = [2, 32], strides = [1, 1]} : vector<2x128xf32> to vector<2x32xf32>
    %85 = vector.extract_strided_slice %81 {offsets = [0, 96], sizes = [2, 32], strides = [1, 1]} : vector<2x128xf32> to vector<2x32xf32>
    %86 = arith.mulf %83, %71 : vector<2x32xf32>
    %87 = arith.mulf %82, %84 : vector<2x32xf32>
    %88 = arith.addf %86, %87 : vector<2x32xf32>
    %89 = math.tanh %88 : vector<2x32xf32>
    %90 = arith.mulf %85, %89 : vector<2x32xf32>
    %91 = vector.extract_strided_slice %10 {offsets = [10, 0], sizes = [2, 128], strides = [1, 1]} : vector<16x128xf32> to vector<2x128xf32>
    %cst_26 = arith.constant dense<0.000000e+00> : vector<2x128xf32>
    %92 = tpu.matmul %90, %0, %cst_26 {dimension_numbers = #tpu.dot_dimension_numbers<[1], [0], [0], [1], [0, 0, 1, 1], [], []>} : vector<2x32xf32>, vector<32x128xf32>, vector<2x128xf32> -> vector<2x128xf32>
    %93 = arith.addf %91, %92 : vector<2x128xf32>
    %94 = math.tanh %93 : vector<2x128xf32>
    %cst_27 = arith.constant 5.000000e-01 : f32
    %95 = vector.broadcast %cst_27 : f32 to vector<2x128xf32>
    %96 = arith.mulf %95, %94 : vector<2x128xf32>
    %cst_28 = arith.constant 5.000000e-01 : f32
    %97 = vector.broadcast %cst_28 : f32 to vector<2x128xf32>
    %98 = arith.addf %96, %97 : vector<2x128xf32>
    %99 = vector.extract_strided_slice %98 {offsets = [0, 0], sizes = [2, 32], strides = [1, 1]} : vector<2x128xf32> to vector<2x32xf32>
    %100 = vector.extract_strided_slice %98 {offsets = [0, 32], sizes = [2, 32], strides = [1, 1]} : vector<2x128xf32> to vector<2x32xf32>
    %101 = vector.extract_strided_slice %94 {offsets = [0, 64], sizes = [2, 32], strides = [1, 1]} : vector<2x128xf32> to vector<2x32xf32>
    %102 = vector.extract_strided_slice %98 {offsets = [0, 96], sizes = [2, 32], strides = [1, 1]} : vector<2x128xf32> to vector<2x32xf32>
    %103 = arith.mulf %100, %88 : vector<2x32xf32>
    %104 = arith.mulf %99, %101 : vector<2x32xf32>
    %105 = arith.addf %103, %104 : vector<2x32xf32>
    %106 = math.tanh %105 : vector<2x32xf32>
    %107 = arith.mulf %102, %106 : vector<2x32xf32>
    %108 = vector.extract_strided_slice %10 {offsets = [12, 0], sizes = [2, 128], strides = [1, 1]} : vector<16x128xf32> to vector<2x128xf32>
    %cst_29 = arith.constant dense<0.000000e+00> : vector<2x128xf32>
    %109 = tpu.matmul %107, %0, %cst_29 {dimension_numbers = #tpu.dot_dimension_numbers<[1], [0], [0], [1], [0, 0, 1, 1], [], []>} : vector<2x32xf32>, vector<32x128xf32>, vector<2x128xf32> -> vector<2x128xf32>
    %110 = arith.addf %108, %109 : vector<2x128xf32>
    %111 = math.tanh %110 : vector<2x128xf32>
    %cst_30 = arith.constant 5.000000e-01 : f32
    %112 = vector.broadcast %cst_30 : f32 to vector<2x128xf32>
    %113 = arith.mulf %112, %111 : vector<2x128xf32>
    %cst_31 = arith.constant 5.000000e-01 : f32
    %114 = vector.broadcast %cst_31 : f32 to vector<2x128xf32>
    %115 = arith.addf %113, %114 : vector<2x128xf32>
    %116 = vector.extract_strided_slice %115 {offsets = [0, 0], sizes = [2, 32], strides = [1, 1]} : vector<2x128xf32> to vector<2x32xf32>
    %117 = vector.extract_strided_slice %115 {offsets = [0, 32], sizes = [2, 32], strides = [1, 1]} : vector<2x128xf32> to vector<2x32xf32>
    %118 = vector.extract_strided_slice %111 {offsets = [0, 64], sizes = [2, 32], strides = [1, 1]} : vector<2x128xf32> to vector<2x32xf32>
    %119 = vector.extract_strided_slice %115 {offsets = [0, 96], sizes = [2, 32], strides = [1, 1]} : vector<2x128xf32> to vector<2x32xf32>
    %120 = arith.mulf %117, %105 : vector<2x32xf32>
    %121 = arith.mulf %116, %118 : vector<2x32xf32>
    %122 = arith.addf %120, %121 : vector<2x32xf32>
    %123 = math.tanh %122 : vector<2x32xf32>
    %124 = arith.mulf %119, %123 : vector<2x32xf32>
    %125 = vector.extract_strided_slice %10 {offsets = [14, 0], sizes = [2, 128], strides = [1, 1]} : vector<16x128xf32> to vector<2x128xf32>
    %cst_32 = arith.constant dense<0.000000e+00> : vector<2x128xf32>
    %126 = tpu.matmul %124, %0, %cst_32 {dimension_numbers = #tpu.dot_dimension_numbers<[1], [0], [0], [1], [0, 0, 1, 1], [], []>} : vector<2x32xf32>, vector<32x128xf32>, vector<2x128xf32> -> vector<2x128xf32>
    %127 = arith.addf %125, %126 : vector<2x128xf32>
    %128 = math.tanh %127 : vector<2x128xf32>
    %cst_33 = arith.constant 5.000000e-01 : f32
    %129 = vector.broadcast %cst_33 : f32 to vector<2x128xf32>
    %130 = arith.mulf %129, %128 : vector<2x128xf32>
    %cst_34 = arith.constant 5.000000e-01 : f32
    %131 = vector.broadcast %cst_34 : f32 to vector<2x128xf32>
    %132 = arith.addf %130, %131 : vector<2x128xf32>
    %133 = vector.extract_strided_slice %132 {offsets = [0, 0], sizes = [2, 32], strides = [1, 1]} : vector<2x128xf32> to vector<2x32xf32>
    %134 = vector.extract_strided_slice %132 {offsets = [0, 32], sizes = [2, 32], strides = [1, 1]} : vector<2x128xf32> to vector<2x32xf32>
    %135 = vector.extract_strided_slice %128 {offsets = [0, 64], sizes = [2, 32], strides = [1, 1]} : vector<2x128xf32> to vector<2x32xf32>
    %136 = vector.extract_strided_slice %132 {offsets = [0, 96], sizes = [2, 32], strides = [1, 1]} : vector<2x128xf32> to vector<2x32xf32>
    %137 = arith.mulf %134, %122 : vector<2x32xf32>
    %138 = arith.mulf %133, %135 : vector<2x32xf32>
    %139 = arith.addf %137, %138 : vector<2x32xf32>
    %140 = math.tanh %139 : vector<2x32xf32>
    %141 = arith.mulf %136, %140 : vector<2x32xf32>
    %cst_35 = arith.constant dense<0.000000e+00> : vector<2x16xf32>
    %142 = tpu.matmul %141, %3, %cst_35 {dimension_numbers = #tpu.dot_dimension_numbers<[1], [0], [0], [1], [0, 0, 1, 1], [], []>} : vector<2x32xf32>, vector<32x16xf32>, vector<2x16xf32> -> vector<2x16xf32>
    %143 = vector.broadcast %4 : vector<1x16xf32> to vector<2x16xf32>
    %144 = arith.addf %142, %143 : vector<2x16xf32>
    %cst_36 = arith.constant 0.000000e+00 : f32
    %145 = vector.broadcast %cst_36 : f32 to vector<2x16xf32>
    %146 = arith.maximumf %144, %145 : vector<2x16xf32>
    %147 = vector.broadcast %5 : vector<1x16xf32> to vector<2x16xf32>
    %148 = arith.mulf %146, %147 : vector<2x16xf32>
    %cst_37 = arith.constant dense<0.000000e+00> : vector<2xf32>
    %149 = vector.multi_reduction <add>, %148, %cst_37 [1] : vector<2x16xf32> to vector<2xf32>
    %150 = vector.shape_cast %149 : vector<2xf32> to vector<2x1xf32>
    %151 = vector.broadcast %6 : vector<1x1xf32> to vector<2x1xf32>
    %152 = arith.addf %150, %151 : vector<2x1xf32>
    %c0_38 = arith.constant 0 : index
    %c0_39 = arith.constant 0 : index
    %153 = vector.load %arg3[%c0_38, %c0_39] : memref<2x1xf32, #tpu.memory_space<vmem>>, vector<2x1xf32>
    tpu.vector_store %arg3[%c0_38, %c0_39], %152 {strides = array<i32>} : memref<2x1xf32, #tpu.memory_space<vmem>>, vector<2x1xf32>,
    return
  }
}

</mosaic_0001>

<llo_original>
// kernel: tpu_custom_call.1
$region0: #{tpu_custom_call.1}
  #allocation0 [shape = 'u32[]', space=smem, size = 0x4, offset = 0x4, fixed_abs, tag = 'smem constant byte address 0x4 - core index']
  #allocation1 [shape = 'u32[144,128]{1,0:T(1,128)}', space=vmem, size = 0x12000, scoped, tag = 'internal scratch']
  %s0 = inlined_call_operand.vmem [shape: f32[16,2], index: 0, kind: input, shape index: {}]
  %s1 = inlined_call_operand.vmem [shape: f32[35,128], index: 1, kind: input, shape index: {}]
  %s2 = inlined_call_operand.vmem [shape: f32[35,16], index: 2, kind: input, shape index: {}]
  %s3 = inlined_call_operand.vmem [shape: f32[2,1], index: 3, kind: output, shape index: {}]
  %s4 = sld [smem:[#allocation0]]
  $region22: #{tpu_custom_call.1} parent=0
    _
  %s6 = ssub.s32 1, %s4
  %s7 = scalar_select 0, %s6, %s4
  // Predicated region
  $region2: #{tpu_custom_call.1} parent=0 // pred_check
    _
  $region3: #{tpu_custom_call.1} parent=0 // pred_check_branch
    %9 = sbr.rel (0) target = $region5
  $region4: #{tpu_custom_call.1} parent=0 // pred_region
    _
  $region5: #{tpu_custom_call.1} parent=0 // pred_fallthru
    _
  // Predicated region
  $region6: #{tpu_custom_call.1} parent=0 // pred_check
    _
  $region7: #{tpu_custom_call.1} parent=0 // pred_check_branch
    %11 = sbr.rel (0) target = $region9
  $region8: #{tpu_custom_call.1} parent=0 // pred_region
    _
  $region9: #{tpu_custom_call.1} parent=0 // pred_fallthru
    _
  // Predicated region
  $region10: #{tpu_custom_call.1} parent=0 // pred_check
    _
  $region11: #{tpu_custom_call.1} parent=0 // pred_check_branch
    %13 = sbr.rel (0) target = $region13
  $region12: #{tpu_custom_call.1} parent=0 // pred_region
    _
  $region13: #{tpu_custom_call.1} parent=0 // pred_fallthru
    _
  %v14 = vld [vmem:[%s1] sm:$0xff]
  %v15 = vld [vmem:[%s1 + $0x8] sm:$0xff]
  %v16 = vld [vmem:[%s1 + $0x10] sm:$0xff]
  %v17 = vld [vmem:[%s1 + $0x18] sm:$0xff]
  %v18 = vld [vmem:[%s1 + $0x20] sm:$0x3]
  %v19 = vld [vmem:[%s1 + $0x22] sm:$0x1]
  %v20 = vld [vmem:[%s2] sm:$0xff]
  %v21 = vld [vmem:[%s2 + $0x8] sm:$0xff]
  %v22 = vld [vmem:[%s2 + $0x10] sm:$0xff]
  %v23 = vld [vmem:[%s2 + $0x18] sm:$0xff]
  %v24 = vld [vmem:[%s2 + $0x20] sm:$0x1]
  %v25 = vld [vmem:[%s2 + $0x21] sm:$0x1]
  %v26 = vld [vmem:[%s2 + $0x22] sm:$0x1]
  %v27 = vld [vmem:[%s0] sm:$0xff]
  %v28 = vld [vmem:[%s0 + $0x8] sm:$0xff]
  %v29 = vlaneseq
  %v30 = vshrl.u32 %v29, 7
  %v31 = vsub.s32 0, %v30
  %v32 = vrot.slane %v19, %v31
  %vm33 = vcmask 15360
  %v35 = vsel %vm33, %v27, 0
  %v38 = vsel %vm33, %v28, 0
  %vm40 = vcmask 1041408
  %v42 = vsel %vm40, %v18, 0
  %44 = vmatprep.subr.mxu0 0.0
  %45 = vmatpush1.msra.mxu0 0.0
  %46 = vmatprep.subr.mxu0 0.0
  %47 = vmatpush1.msra.mxu0 0.0
  %48 = vmatprep.subr.mxu0 0.0
  %49 = vmatpush1.msra.mxu0 0.0
  %50 = vmatprep.subr.mxu0 0.0
  %51 = vmatpush1.msra.mxu0 0.0
  %52 = vmatprep.subr.mxu0 0.0
  %53 = vmatpush1.msra.mxu0 0.0
  %54 = vmatprep.subr.mxu0 0.0
  %55 = vmatpush1.msra.mxu0 0.0
  %56 = vmatprep.subr.mxu0 0.0
  %57 = vmatpush1.msra.mxu0 0.0
  %58 = vmatprep.subr.mxu0 0.0
  %59 = vmatpush1.msra.mxu0 0.0
  %60 = vmatprep.subr.mxu0 0.0
  %61 = vmatpush1.msra.mxu0 0.0
  %62 = vmatprep.subr.mxu0 0.0
  %63 = vmatpush1.msra.mxu0 0.0
  %64 = vmatprep.subr.mxu0 0.0
  %65 = vmatpush1.msra.mxu0 0.0
  %66 = vmatprep.subr.mxu0 0.0
  %67 = vmatpush1.msra.mxu0 0.0
  %68 = vmatprep.subr.mxu0 0.0
  %69 = vmatpush1.msra.mxu0 0.0
  %70 = vmatprep.subr.mxu0 0.0
  %71 = vmatpush1.msra.mxu0 0.0
  %72 = vmatprep.subr.mxu0 0.0
  %73 = vmatpush1.msra.mxu0 0.0
  %74 = vmatprep.subr.mxu0 0.0
  %75 = vmatpush1.msra.mxu0 %v42
  %76 = vmatprep.subr.mxu0 0.0
  %77 = vmatpush2.msra.mxu0 0.0
  %78 = vmatprep.subr.mxu0 0.0
  %79 = vmatpush2.msra.mxu0 0.0
  %80 = vmatprep.subr.mxu0 0.0
  %81 = vmatpush2.msra.mxu0 0.0
  %82 = vmatprep.subr.mxu0 0.0
  %83 = vmatpush2.msra.mxu0 0.0
  %84 = vmatprep.subr.mxu0 0.0
  %85 = vmatpush2.msra.mxu0 0.0
  %86 = vmatprep.subr.mxu0 0.0
  %87 = vmatpush2.msra.mxu0 0.0
  %88 = vmatprep.subr.mxu0 0.0
  %89 = vmatpush2.msra.mxu0 0.0
  %90 = vmatprep.subr.mxu0 0.0
  %91 = vmatpush2.msra.mxu0 0.0
  %92 = vmatprep.subr.mxu0 0.0
  %93 = vmatpush2.msra.mxu0 0.0
  %94 = vmatprep.subr.mxu0 0.0
  %95 = vmatpush2.msra.mxu0 0.0
  %96 = vmatprep.subr.mxu0 0.0
  %97 = vmatpush2.msra.mxu0 0.0
  %98 = vmatprep.subr.mxu0 0.0
  %99 = vmatpush2.msra.mxu0 0.0
  %100 = vmatprep.subr.mxu0 0.0
  %101 = vmatpush2.msra.mxu0 0.0
  %102 = vmatprep.subr.mxu0 0.0
  %103 = vmatpush2.msra.mxu0 0.0
  %104 = vmatprep.subr.mxu0 0.0
  %105 = vmatpush2.msra.mxu0 0.0
  %106 = vmatprep.subr.mxu0 0.0
  %107 = vmatpush2.msra.mxu0 0.0
  %108 = vmatprep.mubr.f32.mxu0 0.0
  %109 = vmatmul.mubr.f32.gmra.mxu0 %v35
  %v110 = vpop.f32.mrf.mxu0
  %v111 = vadd.f32 %v32, %v110
  %v112 = vpop.f32.mrf.mxu0
  %113 = vmatprep.mubr.f32.mxu0 0.0
  %114 = vmatmul.mubr.f32.gmra.mxu0 %v38
  %v115 = vpop.f32.mrf.mxu0
  %v116 = vadd.f32 %v32, %v115
  %v117 = vpop.f32.mrf.mxu0
  %118 = vdwg.mxu0
  %v119 = vtanh.pop %v111
  %v120 = vmul.f32 %v119, 0.5
  %v121 = vadd.f32 %v120, 0.5
  %123 = vrot.lane.b32.xlu0 %v119, 64
  %v124 = vpop.permute.xlu0 %123
  %v126 = vmul.f32 %v121, %v124
  %v127 = vtanh.pop %v126
  %129 = vrot.lane.b32.xlu0 %v127, 96
  %v130 = vpop.permute.xlu0 %129
  %v132 = vmul.f32 %v121, %v130
  %134 = vrot.lane.b32.xlu0 %v132, 32
  %v135 = vpop.permute.xlu0 %134
  %vm136 = vcmask 261120
  %v137 = vsel %vm136, %v135, 0
  %139 = vmatprep.subr.mxu0 0.0
  %140 = vmatpush1.msra.mxu0 0.0
  %141 = vmatprep.subr.mxu0 0.0
  %142 = vmatpush1.msra.mxu0 0.0
  %143 = vmatprep.subr.mxu0 0.0
  %144 = vmatpush1.msra.mxu0 0.0
  %145 = vmatprep.subr.mxu0 0.0
  %146 = vmatpush1.msra.mxu0 0.0
  %147 = vmatprep.subr.mxu0 0.0
  %148 = vmatpush1.msra.mxu0 0.0
  %149 = vmatprep.subr.mxu0 0.0
  %150 = vmatpush1.msra.mxu0 0.0
  %151 = vmatprep.subr.mxu0 0.0
  %152 = vmatpush1.msra.mxu0 0.0
  %153 = vmatprep.subr.mxu0 0.0
  %154 = vmatpush1.msra.mxu0 0.0
  %155 = vmatprep.subr.mxu0 0.0
  %156 = vmatpush1.msra.mxu0 0.0
  %157 = vmatprep.subr.mxu0 0.0
  %158 = vmatpush1.msra.mxu0 0.0
  %159 = vmatprep.subr.mxu0 0.0
  %160 = vmatpush1.msra.mxu0 0.0
  %161 = vmatprep.subr.mxu0 0.0
  %162 = vmatpush1.msra.mxu0 0.0
  %163 = vmatprep.subr.mxu0 0.0
  %164 = vmatpush1.msra.mxu0 %v17
  %165 = vmatprep.subr.mxu0 0.0
  %166 = vmatpush1.msra.mxu0 %v16
  %167 = vmatprep.subr.mxu0 0.0
  %168 = vmatpush1.msra.mxu0 %v15
  %169 = vmatprep.subr.mxu0 0.0
  %170 = vmatpush1.msra.mxu0 %v14
  %171 = vmatprep.subr.mxu0 0.0
  %172 = vmatpush2.msra.mxu0 0.0
  %173 = vmatprep.subr.mxu0 0.0
  %174 = vmatpush2.msra.mxu0 0.0
  %175 = vmatprep.subr.mxu0 0.0
  %176 = vmatpush2.msra.mxu0 0.0
  %177 = vmatprep.subr.mxu0 0.0
  %178 = vmatpush2.msra.mxu0 0.0
  %179 = vmatprep.subr.mxu0 0.0
  %180 = vmatpush2.msra.mxu0 0.0
  %181 = vmatprep.subr.mxu0 0.0
  %182 = vmatpush2.msra.mxu0 0.0
  %183 = vmatprep.subr.mxu0 0.0
  %184 = vmatpush2.msra.mxu0 0.0
  %185 = vmatprep.subr.mxu0 0.0
  %186 = vmatpush2.msra.mxu0 0.0
  %187 = vmatprep.subr.mxu0 0.0
  %188 = vmatpush2.msra.mxu0 0.0
  %189 = vmatprep.subr.mxu0 0.0
  %190 = vmatpush2.msra.mxu0 0.0
  %191 = vmatprep.subr.mxu0 0.0
  %192 = vmatpush2.msra.mxu0 0.0
  %193 = vmatprep.subr.mxu0 0.0
  %194 = vmatpush2.msra.mxu0 0.0
  %195 = vmatprep.subr.mxu0 0.0
  %196 = vmatpush2.msra.mxu0 0.0
  %197 = vmatprep.subr.mxu0 0.0
  %198 = vmatpush2.msra.mxu0 0.0
  %199 = vmatprep.subr.mxu0 0.0
  %200 = vmatpush2.msra.mxu0 0.0
  %201 = vmatprep.subr.mxu0 0.0
  %202 = vmatpush2.msra.mxu0 0.0
  %203 = vmatprep.mubr.f32.mxu0 0.0
  %204 = vmatmul.mubr.f32.gmra.mxu0 %v137
  %v205 = vpop.f32.mrf.mxu0
  %v206 = vadd.f32 0.0, %v205
  %v207 = vpop.f32.mrf.mxu0
  %208 = vdwg.mxu0
  %v210 = vrot.slane %v206, 6
  %v212 = vadd.f32 %v111, %v210
  %v213 = vtanh.pop %v212
  %v214 = vmul.f32 %v213, 0.5
  %v215 = vadd.f32 %v214, 0.5
  %v217 = vrot.slane %v126, 6
  %218 = vrot.lane.b32.xlu0 %v217, 32
  %v219 = vpop.permute.xlu0 %218
  %v221 = vmul.f32 %v215, %v219
  %223 = vrot.lane.b32.xlu0 %v213, 64
  %v224 = vpop.permute.xlu0 %223
  %v226 = vmul.f32 %v215, %v224
  %228 = vrot.lane.b32.xlu0 %v226, 32
  %v229 = vpop.permute.xlu0 %228
  %v231 = vadd.f32 %v221, %v229
  %v232 = vtanh.pop %v231
  %234 = vrot.lane.b32.xlu0 %v232, 64
  %v235 = vpop.permute.xlu0 %234
  %v237 = vmul.f32 %v215, %v235
  %v239 = vrot.slane %v237, 2
  %240 = vrot.lane.b32.xlu0 %v239, 32
  %v241 = vpop.permute.xlu0 %240
  %v242 = vsel %vm136, %v241, 0
  %244 = vmatprep.subr.mxu0 0.0
  %245 = vmatpush1.msra.mxu0 0.0
  %246 = vmatprep.subr.mxu0 0.0
  %247 = vmatpush1.msra.mxu0 0.0
  %248 = vmatprep.subr.mxu0 0.0
  %249 = vmatpush1.msra.mxu0 0.0
  %250 = vmatprep.subr.mxu0 0.0
  %251 = vmatpush1.msra.mxu0 0.0
  %252 = vmatprep.subr.mxu0 0.0
  %253 = vmatpush1.msra.mxu0 0.0
  %254 = vmatprep.subr.mxu0 0.0
  %255 = vmatpush1.msra.mxu0 0.0
  %256 = vmatprep.subr.mxu0 0.0
  %257 = vmatpush1.msra.mxu0 0.0
  %258 = vmatprep.subr.mxu0 0.0
  %259 = vmatpush1.msra.mxu0 0.0
  %260 = vmatprep.subr.mxu0 0.0
  %261 = vmatpush1.msra.mxu0 0.0
  %262 = vmatprep.subr.mxu0 0.0
  %263 = vmatpush1.msra.mxu0 0.0
  %264 = vmatprep.subr.mxu0 0.0
  %265 = vmatpush1.msra.mxu0 0.0
  %266 = vmatprep.subr.mxu0 0.0
  %267 = vmatpush1.msra.mxu0 0.0
  %268 = vmatprep.subr.mxu0 0.0
  %269 = vmatpush1.msra.mxu0 %v17
  %270 = vmatprep.subr.mxu0 0.0
  %271 = vmatpush1.msra.mxu0 %v16
  %272 = vmatprep.subr.mxu0 0.0
  %273 = vmatpush1.msra.mxu0 %v15
  %274 = vmatprep.subr.mxu0 0.0
  %275 = vmatpush1.msra.mxu0 %v14
  %276 = vmatprep.subr.mxu0 0.0
  %277 = vmatpush2.msra.mxu0 0.0
  %278 = vmatprep.subr.mxu0 0.0
  %279 = vmatpush2.msra.mxu0 0.0
  %280 = vmatprep.subr.mxu0 0.0
  %281 = vmatpush2.msra.mxu0 0.0
  %282 = vmatprep.subr.mxu0 0.0
  %283 = vmatpush2.msra.mxu0 0.0
  %284 = vmatprep.subr.mxu0 0.0
  %285 = vmatpush2.msra.mxu0 0.0
  %286 = vmatprep.subr.mxu0 0.0
  %287 = vmatpush2.msra.mxu0 0.0
  %288 = vmatprep.subr.mxu0 0.0
  %289 = vmatpush2.msra.mxu0 0.0
  %290 = vmatprep.subr.mxu0 0.0
  %291 = vmatpush2.msra.mxu0 0.0
  %292 = vmatprep.subr.mxu0 0.0
  %293 = vmatpush2.msra.mxu0 0.0
  %294 = vmatprep.subr.mxu0 0.0
  %295 = vmatpush2.msra.mxu0 0.0
  %296 = vmatprep.subr.mxu0 0.0
  %297 = vmatpush2.msra.mxu0 0.0
  %298 = vmatprep.subr.mxu0 0.0
  %299 = vmatpush2.msra.mxu0 0.0
  %300 = vmatprep.subr.mxu0 0.0
  %301 = vmatpush2.msra.mxu0 0.0
  %302 = vmatprep.subr.mxu0 0.0
  %303 = vmatpush2.msra.mxu0 0.0
  %304 = vmatprep.subr.mxu0 0.0
  %305 = vmatpush2.msra.mxu0 0.0
  %306 = vmatprep.subr.mxu0 0.0
  %307 = vmatpush2.msra.mxu0 0.0
  %308 = vmatprep.mubr.f32.mxu0 0.0
  %309 = vmatmul.mubr.f32.gmra.mxu0 %v242
  %v310 = vpop.f32.mrf.mxu0
  %v311 = vadd.f32 0.0, %v310
  %v312 = vpop.f32.mrf.mxu0
  %313 = vdwg.mxu0
  %v315 = vrot.slane %v311, 4
  %v317 = vadd.f32 %v111, %v315
  %v318 = vtanh.pop %v317
  %v319 = vmul.f32 %v318, 0.5
  %v320 = vadd.f32 %v319, 0.5
  %v322 = vrot.slane %v231, 6
  %v324 = vmul.f32 %v320, %v322
  %326 = vrot.lane.b32.xlu0 %v318, 64
  %v327 = vpop.permute.xlu0 %326
  %v329 = vmul.f32 %v320, %v327
  %331 = vrot.lane.b32.xlu0 %v329, 32
  %v332 = vpop.permute.xlu0 %331
  %v334 = vadd.f32 %v324, %v332
  %v335 = vtanh.pop %v334
  %337 = vrot.lane.b32.xlu0 %v335, 64
  %v338 = vpop.permute.xlu0 %337
  %v340 = vmul.f32 %v320, %v338
  %v342 = vrot.slane %v340, 4
  %343 = vrot.lane.b32.xlu0 %v342, 32
  %v344 = vpop.permute.xlu0 %343
  %v345 = vsel %vm136, %v344, 0
  %347 = vmatprep.subr.mxu0 0.0
  %348 = vmatpush1.msra.mxu0 0.0
  %349 = vmatprep.subr.mxu0 0.0
  %350 = vmatpush1.msra.mxu0 0.0
  %351 = vmatprep.subr.mxu0 0.0
  %352 = vmatpush1.msra.mxu0 0.0
  %353 = vmatprep.subr.mxu0 0.0
  %354 = vmatpush1.msra.mxu0 0.0
  %355 = vmatprep.subr.mxu0 0.0
  %356 = vmatpush1.msra.mxu0 0.0
  %357 = vmatprep.subr.mxu0 0.0
  %358 = vmatpush1.msra.mxu0 0.0
  %359 = vmatprep.subr.mxu0 0.0
  %360 = vmatpush1.msra.mxu0 0.0
  %361 = vmatprep.subr.mxu0 0.0
  %362 = vmatpush1.msra.mxu0 0.0
  %363 = vmatprep.subr.mxu0 0.0
  %364 = vmatpush1.msra.mxu0 0.0
  %365 = vmatprep.subr.mxu0 0.0
  %366 = vmatpush1.msra.mxu0 0.0
  %367 = vmatprep.subr.mxu0 0.0
  %368 = vmatpush1.msra.mxu0 0.0
  %369 = vmatprep.subr.mxu0 0.0
  %370 = vmatpush1.msra.mxu0 0.0
  %371 = vmatprep.subr.mxu0 0.0
  %372 = vmatpush1.msra.mxu0 %v17
  %373 = vmatprep.subr.mxu0 0.0
  %374 = vmatpush1.msra.mxu0 %v16
  %375 = vmatprep.subr.mxu0 0.0
  %376 = vmatpush1.msra.mxu0 %v15
  %377 = vmatprep.subr.mxu0 0.0
  %378 = vmatpush1.msra.mxu0 %v14
  %379 = vmatprep.subr.mxu0 0.0
  %380 = vmatpush2.msra.mxu0 0.0
  %381 = vmatprep.subr.mxu0 0.0
  %382 = vmatpush2.msra.mxu0 0.0
  %383 = vmatprep.subr.mxu0 0.0
  %384 = vmatpush2.msra.mxu0 0.0
  %385 = vmatprep.subr.mxu0 0.0
  %386 = vmatpush2.msra.mxu0 0.0
  %387 = vmatprep.subr.mxu0 0.0
  %388 = vmatpush2.msra.mxu0 0.0
  %389 = vmatprep.subr.mxu0 0.0
  %390 = vmatpush2.msra.mxu0 0.0
  %391 = vmatprep.subr.mxu0 0.0
  %392 = vmatpush2.msra.mxu0 0.0
  %393 = vmatprep.subr.mxu0 0.0
  %394 = vmatpush2.msra.mxu0 0.0
  %395 = vmatprep.subr.mxu0 0.0
  %396 = vmatpush2.msra.mxu0 0.0
  %397 = vmatprep.subr.mxu0 0.0
  %398 = vmatpush2.msra.mxu0 0.0
  %399 = vmatprep.subr.mxu0 0.0
  %400 = vmatpush2.msra.mxu0 0.0
  %401 = vmatprep.subr.mxu0 0.0
  %402 = vmatpush2.msra.mxu0 0.0
  %403 = vmatprep.subr.mxu0 0.0
  %404 = vmatpush2.msra.mxu0 0.0
  %405 = vmatprep.subr.mxu0 0.0
  %406 = vmatpush2.msra.mxu0 0.0
  %407 = vmatprep.subr.mxu0 0.0
  %408 = vmatpush2.msra.mxu0 0.0
  %409 = vmatprep.subr.mxu0 0.0
  %410 = vmatpush2.msra.mxu0 0.0
  %411 = vmatprep.mubr.f32.mxu0 0.0
  %412 = vmatmul.mubr.f32.gmra.mxu0 %v345
  %v413 = vpop.f32.mrf.mxu0
  %v414 = vadd.f32 0.0, %v413
  %v415 = vpop.f32.mrf.mxu0
  %416 = vdwg.mxu0
  %v418 = vrot.slane %v414, 2
  %v420 = vadd.f32 %v111, %v418
  %v421 = vtanh.pop %v420
  %v422 = vmul.f32 %v421, 0.5
  %v423 = vadd.f32 %v422, 0.5
  %v425 = vrot.slane %v334, 6
  %v427 = vmul.f32 %v423, %v425
  %429 = vrot.lane.b32.xlu0 %v421, 64
  %v430 = vpop.permute.xlu0 %429
  %v432 = vmul.f32 %v423, %v430
  %434 = vrot.lane.b32.xlu0 %v432, 32
  %v435 = vpop.permute.xlu0 %434
  %v437 = vadd.f32 %v427, %v435
  %v438 = vtanh.pop %v437
  %440 = vrot.lane.b32.xlu0 %v438, 64
  %v441 = vpop.permute.xlu0 %440
  %v443 = vmul.f32 %v423, %v441
  %v445 = vrot.slane %v443, 6
  %446 = vrot.lane.b32.xlu0 %v445, 32
  %v447 = vpop.permute.xlu0 %446
  %v448 = vsel %vm136, %v447, 0
  %450 = vmatprep.subr.mxu0 0.0
  %451 = vmatpush1.msra.mxu0 0.0
  %452 = vmatprep.subr.mxu0 0.0
  %453 = vmatpush1.msra.mxu0 0.0
  %454 = vmatprep.subr.mxu0 0.0
  %455 = vmatpush1.msra.mxu0 0.0
  %456 = vmatprep.subr.mxu0 0.0
  %457 = vmatpush1.msra.mxu0 0.0
  %458 = vmatprep.subr.mxu0 0.0
  %459 = vmatpush1.msra.mxu0 0.0
  %460 = vmatprep.subr.mxu0 0.0
  %461 = vmatpush1.msra.mxu0 0.0
  %462 = vmatprep.subr.mxu0 0.0
  %463 = vmatpush1.msra.mxu0 0.0
  %464 = vmatprep.subr.mxu0 0.0
  %465 = vmatpush1.msra.mxu0 0.0
  %466 = vmatprep.subr.mxu0 0.0
  %467 = vmatpush1.msra.mxu0 0.0
  %468 = vmatprep.subr.mxu0 0.0
  %469 = vmatpush1.msra.mxu0 0.0
  %470 = vmatprep.subr.mxu0 0.0
  %471 = vmatpush1.msra.mxu0 0.0
  %472 = vmatprep.subr.mxu0 0.0
  %473 = vmatpush1.msra.mxu0 0.0
  %474 = vmatprep.subr.mxu0 0.0
  %475 = vmatpush1.msra.mxu0 %v17
  %476 = vmatprep.subr.mxu0 0.0
  %477 = vmatpush1.msra.mxu0 %v16
  %478 = vmatprep.subr.mxu0 0.0
  %479 = vmatpush1.msra.mxu0 %v15
  %480 = vmatprep.subr.mxu0 0.0
  %481 = vmatpush1.msra.mxu0 %v14
  %482 = vmatprep.subr.mxu0 0.0
  %483 = vmatpush2.msra.mxu0 0.0
  %484 = vmatprep.subr.mxu0 0.0
  %485 = vmatpush2.msra.mxu0 0.0
  %486 = vmatprep.subr.mxu0 0.0
  %487 = vmatpush2.msra.mxu0 0.0
  %488 = vmatprep.subr.mxu0 0.0
  %489 = vmatpush2.msra.mxu0 0.0
  %490 = vmatprep.subr.mxu0 0.0
  %491 = vmatpush2.msra.mxu0 0.0
  %492 = vmatprep.subr.mxu0 0.0
  %493 = vmatpush2.msra.mxu0 0.0
  %494 = vmatprep.subr.mxu0 0.0
  %495 = vmatpush2.msra.mxu0 0.0
  %496 = vmatprep.subr.mxu0 0.0
  %497 = vmatpush2.msra.mxu0 0.0
  %498 = vmatprep.subr.mxu0 0.0
  %499 = vmatpush2.msra.mxu0 0.0
  %500 = vmatprep.subr.mxu0 0.0
  %501 = vmatpush2.msra.mxu0 0.0
  %502 = vmatprep.subr.mxu0 0.0
  %503 = vmatpush2.msra.mxu0 0.0
  %504 = vmatprep.subr.mxu0 0.0
  %505 = vmatpush2.msra.mxu0 0.0
  %506 = vmatprep.subr.mxu0 0.0
  %507 = vmatpush2.msra.mxu0 0.0
  %508 = vmatprep.subr.mxu0 0.0
  %509 = vmatpush2.msra.mxu0 0.0
  %510 = vmatprep.subr.mxu0 0.0
  %511 = vmatpush2.msra.mxu0 0.0
  %512 = vmatprep.subr.mxu0 0.0
  %513 = vmatpush2.msra.mxu0 0.0
  %514 = vmatprep.mubr.f32.mxu0 0.0
  %515 = vmatmul.mubr.f32.gmra.mxu0 %v448
  %v516 = vpop.f32.mrf.mxu0
  %v517 = vadd.f32 0.0, %v516
  %v518 = vpop.f32.mrf.mxu0
  %519 = vdwg.mxu0
  %v520 = vadd.f32 %v116, %v517
  %v521 = vtanh.pop %v520
  %v522 = vmul.f32 %v521, 0.5
  %v523 = vadd.f32 %v522, 0.5
  %v525 = vrot.slane %v437, 6
  %v527 = vmul.f32 %v523, %v525
  %529 = vrot.lane.b32.xlu0 %v521, 64
  %v530 = vpop.permute.xlu0 %529
  %v532 = vmul.f32 %v523, %v530
  %534 = vrot.lane.b32.xlu0 %v532, 32
  %v535 = vpop.permute.xlu0 %534
  %v537 = vadd.f32 %v527, %v535
  %v538 = vtanh.pop %v537
  %540 = vrot.lane.b32.xlu0 %v538, 64
  %v541 = vpop.permute.xlu0 %540
  %v543 = vmul.f32 %v523, %v541
  %545 = vrot.lane.b32.xlu0 %v543, 32
  %v546 = vpop.permute.xlu0 %545
  %v547 = vsel %vm136, %v546, 0
  %549 = vmatprep.subr.mxu0 0.0
  %550 = vmatpush1.msra.mxu0 0.0
  %551 = vmatprep.subr.mxu0 0.0
  %552 = vmatpush1.msra.mxu0 0.0
  %553 = vmatprep.subr.mxu0 0.0
  %554 = vmatpush1.msra.mxu0 0.0
  %555 = vmatprep.subr.mxu0 0.0
  %556 = vmatpush1.msra.mxu0 0.0
  %557 = vmatprep.subr.mxu0 0.0
  %558 = vmatpush1.msra.mxu0 0.0
  %559 = vmatprep.subr.mxu0 0.0
  %560 = vmatpush1.msra.mxu0 0.0
  %561 = vmatprep.subr.mxu0 0.0
  %562 = vmatpush1.msra.mxu0 0.0
  %563 = vmatprep.subr.mxu0 0.0
  %564 = vmatpush1.msra.mxu0 0.0
  %565 = vmatprep.subr.mxu0 0.0
  %566 = vmatpush1.msra.mxu0 0.0
  %567 = vmatprep.subr.mxu0 0.0
  %568 = vmatpush1.msra.mxu0 0.0
  %569 = vmatprep.subr.mxu0 0.0
  %570 = vmatpush1.msra.mxu0 0.0
  %571 = vmatprep.subr.mxu0 0.0
  %572 = vmatpush1.msra.mxu0 0.0
  %573 = vmatprep.subr.mxu0 0.0
  %574 = vmatpush1.msra.mxu0 %v17
  %575 = vmatprep.subr.mxu0 0.0
  %576 = vmatpush1.msra.mxu0 %v16
  %577 = vmatprep.subr.mxu0 0.0
  %578 = vmatpush1.msra.mxu0 %v15
  %579 = vmatprep.subr.mxu0 0.0
  %580 = vmatpush1.msra.mxu0 %v14
  %581 = vmatprep.subr.mxu0 0.0
  %582 = vmatpush2.msra.mxu0 0.0
  %583 = vmatprep.subr.mxu0 0.0
  %584 = vmatpush2.msra.mxu0 0.0
  %585 = vmatprep.subr.mxu0 0.0
  %586 = vmatpush2.msra.mxu0 0.0
  %587 = vmatprep.subr.mxu0 0.0
  %588 = vmatpush2.msra.mxu0 0.0
  %589 = vmatprep.subr.mxu0 0.0
  %590 = vmatpush2.msra.mxu0 0.0
  %591 = vmatprep.subr.mxu0 0.0
  %592 = vmatpush2.msra.mxu0 0.0
  %593 = vmatprep.subr.mxu0 0.0
  %594 = vmatpush2.msra.mxu0 0.0
  %595 = vmatprep.subr.mxu0 0.0
  %596 = vmatpush2.msra.mxu0 0.0
  %597 = vmatprep.subr.mxu0 0.0
  %598 = vmatpush2.msra.mxu0 0.0
  %599 = vmatprep.subr.mxu0 0.0
  %600 = vmatpush2.msra.mxu0 0.0
  %601 = vmatprep.subr.mxu0 0.0
  %602 = vmatpush2.msra.mxu0 0.0
  %603 = vmatprep.subr.mxu0 0.0
  %604 = vmatpush2.msra.mxu0 0.0
  %605 = vmatprep.subr.mxu0 0.0
  %606 = vmatpush2.msra.mxu0 0.0
  %607 = vmatprep.subr.mxu0 0.0
  %608 = vmatpush2.msra.mxu0 0.0
  %609 = vmatprep.subr.mxu0 0.0
  %610 = vmatpush2.msra.mxu0 0.0
  %611 = vmatprep.subr.mxu0 0.0
  %612 = vmatpush2.msra.mxu0 0.0
  %613 = vmatprep.mubr.f32.mxu0 0.0
  %614 = vmatmul.mubr.f32.gmra.mxu0 %v547
  %v615 = vpop.f32.mrf.mxu0
  %v616 = vadd.f32 0.0, %v615
  %v617 = vpop.f32.mrf.mxu0
  %618 = vdwg.mxu0
  %v620 = vrot.slane %v616, 6
  %v622 = vadd.f32 %v116, %v620
  %v623 = vtanh.pop %v622
  %v624 = vmul.f32 %v623, 0.5
  %v625 = vadd.f32 %v624, 0.5
  %v627 = vrot.slane %v537, 6
  %v629 = vmul.f32 %v625, %v627
  %631 = vrot.lane.b32.xlu0 %v623, 64
  %v632 = vpop.permute.xlu0 %631
  %v634 = vmul.f32 %v625, %v632
  %636 = vrot.lane.b32.xlu0 %v634, 32
  %v637 = vpop.permute.xlu0 %636
  %v639 = vadd.f32 %v629, %v637
  %v640 = vtanh.pop %v639
  %642 = vrot.lane.b32.xlu0 %v640, 64
  %v643 = vpop.permute.xlu0 %642
  %v645 = vmul.f32 %v625, %v643
  %v647 = vrot.slane %v645, 2
  %648 = vrot.lane.b32.xlu0 %v647, 32
  %v649 = vpop.permute.xlu0 %648
  %v650 = vsel %vm136, %v649, 0
  %652 = vmatprep.subr.mxu0 0.0
  %653 = vmatpush1.msra.mxu0 0.0
  %654 = vmatprep.subr.mxu0 0.0
  %655 = vmatpush1.msra.mxu0 0.0
  %656 = vmatprep.subr.mxu0 0.0
  %657 = vmatpush1.msra.mxu0 0.0
  %658 = vmatprep.subr.mxu0 0.0
  %659 = vmatpush1.msra.mxu0 0.0
  %660 = vmatprep.subr.mxu0 0.0
  %661 = vmatpush1.msra.mxu0 0.0
  %662 = vmatprep.subr.mxu0 0.0
  %663 = vmatpush1.msra.mxu0 0.0
  %664 = vmatprep.subr.mxu0 0.0
  %665 = vmatpush1.msra.mxu0 0.0
  %666 = vmatprep.subr.mxu0 0.0
  %667 = vmatpush1.msra.mxu0 0.0
  %668 = vmatprep.subr.mxu0 0.0
  %669 = vmatpush1.msra.mxu0 0.0
  %670 = vmatprep.subr.mxu0 0.0
  %671 = vmatpush1.msra.mxu0 0.0
  %672 = vmatprep.subr.mxu0 0.0
  %673 = vmatpush1.msra.mxu0 0.0
  %674 = vmatprep.subr.mxu0 0.0
  %675 = vmatpush1.msra.mxu0 0.0
  %676 = vmatprep.subr.mxu0 0.0
  %677 = vmatpush1.msra.mxu0 %v17
  %678 = vmatprep.subr.mxu0 0.0
  %679 = vmatpush1.msra.mxu0 %v16
  %680 = vmatprep.subr.mxu0 0.0
  %681 = vmatpush1.msra.mxu0 %v15
  %682 = vmatprep.subr.mxu0 0.0
  %683 = vmatpush1.msra.mxu0 %v14
  %684 = vmatprep.subr.mxu0 0.0
  %685 = vmatpush2.msra.mxu0 0.0
  %686 = vmatprep.subr.mxu0 0.0
  %687 = vmatpush2.msra.mxu0 0.0
  %688 = vmatprep.subr.mxu0 0.0
  %689 = vmatpush2.msra.mxu0 0.0
  %690 = vmatprep.subr.mxu0 0.0
  %691 = vmatpush2.msra.mxu0 0.0
  %692 = vmatprep.subr.mxu0 0.0
  %693 = vmatpush2.msra.mxu0 0.0
  %694 = vmatprep.subr.mxu0 0.0
  %695 = vmatpush2.msra.mxu0 0.0
  %696 = vmatprep.subr.mxu0 0.0
  %697 = vmatpush2.msra.mxu0 0.0
  %698 = vmatprep.subr.mxu0 0.0
  %699 = vmatpush2.msra.mxu0 0.0
  %700 = vmatprep.subr.mxu0 0.0
  %701 = vmatpush2.msra.mxu0 0.0
  %702 = vmatprep.subr.mxu0 0.0
  %703 = vmatpush2.msra.mxu0 0.0
  %704 = vmatprep.subr.mxu0 0.0
  %705 = vmatpush2.msra.mxu0 0.0
  %706 = vmatprep.subr.mxu0 0.0
  %707 = vmatpush2.msra.mxu0 0.0
  %708 = vmatprep.subr.mxu0 0.0
  %709 = vmatpush2.msra.mxu0 0.0
  %710 = vmatprep.subr.mxu0 0.0
  %711 = vmatpush2.msra.mxu0 0.0
  %712 = vmatprep.subr.mxu0 0.0
  %713 = vmatpush2.msra.mxu0 0.0
  %714 = vmatprep.subr.mxu0 0.0
  %715 = vmatpush2.msra.mxu0 0.0
  %716 = vmatprep.mubr.f32.mxu0 0.0
  %717 = vmatmul.mubr.f32.gmra.mxu0 %v650
  %v718 = vpop.f32.mrf.mxu0
  %v719 = vadd.f32 0.0, %v718
  %v720 = vpop.f32.mrf.mxu0
  %721 = vdwg.mxu0
  %v723 = vrot.slane %v719, 4
  %v725 = vadd.f32 %v116, %v723
  %v726 = vtanh.pop %v725
  %v727 = vmul.f32 %v726, 0.5
  %v728 = vadd.f32 %v727, 0.5
  %v730 = vrot.slane %v639, 6
  %v732 = vmul.f32 %v728, %v730
  %734 = vrot.lane.b32.xlu0 %v726, 64
  %v735 = vpop.permute.xlu0 %734
  %v737 = vmul.f32 %v728, %v735
  %739 = vrot.lane.b32.xlu0 %v737, 32
  %v740 = vpop.permute.xlu0 %739
  %v742 = vadd.f32 %v732, %v740
  %v743 = vtanh.pop %v742
  %745 = vrot.lane.b32.xlu0 %v743, 64
  %v746 = vpop.permute.xlu0 %745
  %v748 = vmul.f32 %v728, %v746
  %v750 = vrot.slane %v748, 4
  %751 = vrot.lane.b32.xlu0 %v750, 32
  %v752 = vpop.permute.xlu0 %751
  %v753 = vsel %vm136, %v752, 0
  %755 = vmatprep.subr.mxu0 0.0
  %756 = vmatpush1.msra.mxu0 0.0
  %757 = vmatprep.subr.mxu0 0.0
  %758 = vmatpush1.msra.mxu0 0.0
  %759 = vmatprep.subr.mxu0 0.0
  %760 = vmatpush1.msra.mxu0 0.0
  %761 = vmatprep.subr.mxu0 0.0
  %762 = vmatpush1.msra.mxu0 0.0
  %763 = vmatprep.subr.mxu0 0.0
  %764 = vmatpush1.msra.mxu0 0.0
  %765 = vmatprep.subr.mxu0 0.0
  %766 = vmatpush1.msra.mxu0 0.0
  %767 = vmatprep.subr.mxu0 0.0
  %768 = vmatpush1.msra.mxu0 0.0
  %769 = vmatprep.subr.mxu0 0.0
  %770 = vmatpush1.msra.mxu0 0.0
  %771 = vmatprep.subr.mxu0 0.0
  %772 = vmatpush1.msra.mxu0 0.0
  %773 = vmatprep.subr.mxu0 0.0
  %774 = vmatpush1.msra.mxu0 0.0
  %775 = vmatprep.subr.mxu0 0.0
  %776 = vmatpush1.msra.mxu0 0.0
  %777 = vmatprep.subr.mxu0 0.0
  %778 = vmatpush1.msra.mxu0 0.0
  %779 = vmatprep.subr.mxu0 0.0
  %780 = vmatpush1.msra.mxu0 %v17
  %781 = vmatprep.subr.mxu0 0.0
  %782 = vmatpush1.msra.mxu0 %v16
  %783 = vmatprep.subr.mxu0 0.0
  %784 = vmatpush1.msra.mxu0 %v15
  %785 = vmatprep.subr.mxu0 0.0
  %786 = vmatpush1.msra.mxu0 %v14
  %787 = vmatprep.subr.mxu0 0.0
  %788 = vmatpush2.msra.mxu0 0.0
  %789 = vmatprep.subr.mxu0 0.0
  %790 = vmatpush2.msra.mxu0 0.0
  %791 = vmatprep.subr.mxu0 0.0
  %792 = vmatpush2.msra.mxu0 0.0
  %793 = vmatprep.subr.mxu0 0.0
  %794 = vmatpush2.msra.mxu0 0.0
  %795 = vmatprep.subr.mxu0 0.0
  %796 = vmatpush2.msra.mxu0 0.0
  %797 = vmatprep.subr.mxu0 0.0
  %798 = vmatpush2.msra.mxu0 0.0
  %799 = vmatprep.subr.mxu0 0.0
  %800 = vmatpush2.msra.mxu0 0.0
  %801 = vmatprep.subr.mxu0 0.0
  %802 = vmatpush2.msra.mxu0 0.0
  %803 = vmatprep.subr.mxu0 0.0
  %804 = vmatpush2.msra.mxu0 0.0
  %805 = vmatprep.subr.mxu0 0.0
  %806 = vmatpush2.msra.mxu0 0.0
  %807 = vmatprep.subr.mxu0 0.0
  %808 = vmatpush2.msra.mxu0 0.0
  %809 = vmatprep.subr.mxu0 0.0
  %810 = vmatpush2.msra.mxu0 0.0
  %811 = vmatprep.subr.mxu0 0.0
  %812 = vmatpush2.msra.mxu0 0.0
  %813 = vmatprep.subr.mxu0 0.0
  %814 = vmatpush2.msra.mxu0 0.0
  %815 = vmatprep.subr.mxu0 0.0
  %816 = vmatpush2.msra.mxu0 0.0
  %817 = vmatprep.subr.mxu0 0.0
  %818 = vmatpush2.msra.mxu0 0.0
  %819 = vmatprep.mubr.f32.mxu0 0.0
  %820 = vmatmul.mubr.f32.gmra.mxu0 %v753
  %v821 = vpop.f32.mrf.mxu0
  %v822 = vadd.f32 0.0, %v821
  %v823 = vpop.f32.mrf.mxu0
  %824 = vdwg.mxu0
  %v826 = vrot.slane %v822, 2
  %v828 = vadd.f32 %v116, %v826
  %v829 = vtanh.pop %v828
  %v830 = vmul.f32 %v829, 0.5
  %v831 = vadd.f32 %v830, 0.5
  %v833 = vrot.slane %v742, 6
  %v835 = vmul.f32 %v831, %v833
  %837 = vrot.lane.b32.xlu0 %v829, 64
  %v838 = vpop.permute.xlu0 %837
  %v840 = vmul.f32 %v831, %v838
  %842 = vrot.lane.b32.xlu0 %v840, 32
  %v843 = vpop.permute.xlu0 %842
  %v845 = vadd.f32 %v835, %v843
  %v846 = vtanh.pop %v845
  %848 = vrot.lane.b32.xlu0 %v846, 64
  %v849 = vpop.permute.xlu0 %848
  %v851 = vmul.f32 %v831, %v849
  %v852 = vlaneseq
  %v853 = vshrl.u32 %v852, 7
  %v854 = vsub.s32 0, %v853
  %v855 = vrot.slane %v24, %v854
  %v857 = vrot.slane %v851, 6
  %858 = vrot.lane.b32.xlu0 %v857, 32
  %v859 = vpop.permute.xlu0 %858
  %v860 = vsel %vm136, %v859, 0
  %862 = vmatprep.subr.mxu0 0.0
  %863 = vmatpush1.msra.mxu0 0.0
  %864 = vmatprep.subr.mxu0 0.0
  %865 = vmatpush1.msra.mxu0 0.0
  %866 = vmatprep.subr.mxu0 0.0
  %867 = vmatpush1.msra.mxu0 0.0
  %868 = vmatprep.subr.mxu0 0.0
  %869 = vmatpush1.msra.mxu0 0.0
  %870 = vmatprep.subr.mxu0 0.0
  %871 = vmatpush1.msra.mxu0 0.0
  %872 = vmatprep.subr.mxu0 0.0
  %873 = vmatpush1.msra.mxu0 0.0
  %874 = vmatprep.subr.mxu0 0.0
  %875 = vmatpush1.msra.mxu0 0.0
  %876 = vmatprep.subr.mxu0 0.0
  %877 = vmatpush1.msra.mxu0 0.0
  %878 = vmatprep.subr.mxu0 0.0
  %879 = vmatpush1.msra.mxu0 0.0
  %880 = vmatprep.subr.mxu0 0.0
  %881 = vmatpush1.msra.mxu0 0.0
  %882 = vmatprep.subr.mxu0 0.0
  %883 = vmatpush1.msra.mxu0 0.0
  %884 = vmatprep.subr.mxu0 0.0
  %885 = vmatpush1.msra.mxu0 0.0
  %886 = vmatprep.subr.mxu0 0.0
  %887 = vmatpush1.msra.mxu0 %v23
  %888 = vmatprep.subr.mxu0 0.0
  %889 = vmatpush1.msra.mxu0 %v22
  %890 = vmatprep.subr.mxu0 0.0
  %891 = vmatpush1.msra.mxu0 %v21
  %892 = vmatprep.subr.mxu0 0.0
  %893 = vmatpush1.msra.mxu0 %v20
  %894 = vmatprep.subr.mxu0 0.0
  %895 = vmatpush2.msra.mxu0 0.0
  %896 = vmatprep.subr.mxu0 0.0
  %897 = vmatpush2.msra.mxu0 0.0
  %898 = vmatprep.subr.mxu0 0.0
  %899 = vmatpush2.msra.mxu0 0.0
  %900 = vmatprep.subr.mxu0 0.0
  %901 = vmatpush2.msra.mxu0 0.0
  %902 = vmatprep.subr.mxu0 0.0
  %903 = vmatpush2.msra.mxu0 0.0
  %904 = vmatprep.subr.mxu0 0.0
  %905 = vmatpush2.msra.mxu0 0.0
  %906 = vmatprep.subr.mxu0 0.0
  %907 = vmatpush2.msra.mxu0 0.0
  %908 = vmatprep.subr.mxu0 0.0
  %909 = vmatpush2.msra.mxu0 0.0
  %910 = vmatprep.subr.mxu0 0.0
  %911 = vmatpush2.msra.mxu0 0.0
  %912 = vmatprep.subr.mxu0 0.0
  %913 = vmatpush2.msra.mxu0 0.0
  %914 = vmatprep.subr.mxu0 0.0
  %915 = vmatpush2.msra.mxu0 0.0
  %916 = vmatprep.subr.mxu0 0.0
  %917 = vmatpush2.msra.mxu0 0.0
  %918 = vmatprep.subr.mxu0 0.0
  %919 = vmatpush2.msra.mxu0 0.0
  %920 = vmatprep.subr.mxu0 0.0
  %921 = vmatpush2.msra.mxu0 0.0
  %922 = vmatprep.subr.mxu0 0.0
  %923 = vmatpush2.msra.mxu0 0.0
  %924 = vmatprep.subr.mxu0 0.0
  %925 = vmatpush2.msra.mxu0 0.0
  %926 = vmatprep.mubr.f32.mxu0 0.0
  %927 = vmatmul.mubr.f32.gmra.mxu0 %v860
  %v928 = vpop.f32.mrf.mxu0
  %v929 = vadd.f32 %v855, %v928
  %v930 = vpop.f32.mrf.mxu0
  %931 = vdwg.mxu0
  %v932 = vmax.f32 %v929, 0.0
  %v933 = vlaneseq
  %v934 = vshrl.u32 %v933, 7
  %v935 = vsub.s32 0, %v934
  %v936 = vrot.slane %v25, %v935
  %v937 = vmul.f32 %v932, %v936
  %vm938 = vcmask 123904
  %v939 = vsel %vm938, %v937, 0.0
  %940 = vadd.xlane.f32.xlu0 %v939
  %v941 = vpop.xlane.xlu0 %940
  %v942 = vlaneseq
  %v943 = vshrl.u32 %v942, 7
  %v944 = vsub.s32 0, %v943
  %v945 = vrot.slane %v26, %v944
  %v946 = vadd.f32 %v941, %v945
  %vm947 = vcmask 1024
  %948 = vst.msk [vmem:[%s3] sm:$0x3] %vm947, %v946
  // Predicated region
  $region14: #{tpu_custom_call.1} parent=0 // pred_check
    _
  $region15: #{tpu_custom_call.1} parent=0 // pred_check_branch
    %950 = sbr.rel (0) target = $region17
  $region16: #{tpu_custom_call.1} parent=0 // pred_region
    _
  $region17: #{tpu_custom_call.1} parent=0 // pred_fallthru
    _
  // Predicated region
  $region18: #{tpu_custom_call.1} parent=0 // pred_check
    _
  $region19: #{tpu_custom_call.1} parent=0 // pred_check_branch
    %952 = sbr.rel (0) target = $region21
  $region20: #{tpu_custom_call.1} parent=0 // pred_region
    _
  $region21: #{tpu_custom_call.1} parent=0 // pred_fallthru
    _

</llo_original>
